<compile_context>
chip_gen: v6e
topology: v6e:2x2x1
jax: 0.10.0
libtpu: 0.0.40
codegen_flags: <defaults>
</compile_context>

<pallas_src>
import functools

import jax
import jax.numpy as jnp
from jax.experimental import pallas as pl
from jax.experimental.pallas import tpu as pltpu


EMB_DIM = 10
HIDDEN_DIM = 16
NUM_CLASSES = 19
NUM_DIGITS = 10
NUM_OPS = 2

ONEHOT_DIM = 2 * NUM_DIGITS + NUM_OPS + 1          # 23 (x | y | op | bias-1)
BIAS_IDX = ONEHOT_DIM - 1                          # 22
H_AUG = HIDDEN_DIM + 1                             # 17 (hidden | constant-1)
LANE = 128


def _round_up(n, m):
    return ((n + m - 1) // m) * m


def calcnet_kernel(idx_ref, t1t_ref, w2t_ref, out_ref):
    """Feature-major compute.

    idx_ref : (3, TB) int32 with rows [x, y+10, op+20]
    t1t_ref : (17, 23)  = T1^T      (folded emb/W1/b1, plus constant-1 lane)
    w2t_ref : (19, 17)  = W2_aug^T  (fc2 weight with b2 as its last column)
    out_ref : (19, TB)  = logits^T  (lane-dense: TB is a multiple of 128)
    """
    iota = jax.lax.broadcasted_iota(jnp.int32, (ONEHOT_DIM, 1), 0)   # (23, 1)
    idx = idx_ref[...]                                               # (3, TB)

    # Multi-hot (23, TB): the three index ranges are disjoint; row 22 is the
    # constant bias lane.  Boolean ORs + one select (cheapest VALU form).
    hit = ((idx[0:1, :] == iota) | (idx[1:2, :] == iota)
           | (idx[2:3, :] == iota) | (iota == BIAS_IDX))             # (23, TB)
    oh = jnp.where(hit, 1.0, 0.0)                                    # f32

    # fc1 (+b1 via row 22 of T1) and ReLU; row 16 of h stays == 1.
    h = jnp.maximum(
        jnp.dot(t1t_ref[...], oh, preferred_element_type=jnp.float32), 0.0)

    # fc2 (+b2 via column 16 of W2_aug^T).
    out_ref[...] = jnp.dot(w2t_ref[...], h, preferred_element_type=jnp.float32)


def _fold_params(params):
    """Fold embeddings + biases into two dense tables (done once, outside)."""
    emb_d, emb_o, w1, b1, w2, b2 = params
    tx = emb_d @ w1[0 * EMB_DIM:1 * EMB_DIM, :]          # (10, 16)
    ty = emb_d @ w1[1 * EMB_DIM:2 * EMB_DIM, :]          # (10, 16)
    to = emb_o @ w1[2 * EMB_DIM:3 * EMB_DIM, :]          # ( 2, 16)
    t1_main = jnp.concatenate([tx, ty, to, b1[None, :]], axis=0)     # (23, 16)
    ones_col = jnp.zeros((ONEHOT_DIM, 1), jnp.float32).at[BIAS_IDX, 0].set(1.0)
    t1 = jnp.concatenate([t1_main, ones_col], axis=1)                # (23, 17)
    w2_aug = jnp.concatenate([w2, b2[None, :]], axis=0)              # (17, 19)
    # Transposed (feature-major) versions for the kernel.
    return t1.T, w2_aug.T                                            # (17,23),(19,17)


@functools.partial(jax.jit, static_argnames=("tile_b",))
def calcnet_forward(x, y, op, params, tile_b=8192):
    """x, y, op: int (B,) index arrays. Returns (B, NUM_CLASSES) float32."""
    t1t, w2t = _fold_params(params)

    B = x.shape[0]
    idx = jnp.stack(
        [x.astype(jnp.int32),
         y.astype(jnp.int32) + NUM_DIGITS,
         op.astype(jnp.int32) + 2 * NUM_DIGITS],
        axis=0)                                                      # (3, B)

    # Lane-aligned batch tile (multiple of 128).  Cap at ceil(B/2) rounded up
    # so large batches always give >=2 parallel grid steps (both v7x TCs).
    tb = min(_round_up(tile_b, LANE), _round_up((B + 1) // 2, LANE))
    tb = max(tb, LANE)
    b_pad = _round_up(B, tb)
    if b_pad != B:
        # Padded columns get idx == 0, i.e. one-hot rows 0 and 22 set: the
        # resulting garbage output columns are sliced off below.  Do NOT
        # "fix" the pad value into anything outside [0, ONEHOT_DIM).
        idx = jnp.pad(idx, ((0, 0), (0, b_pad - B)))
    grid = (b_pad // tb,)

    cost = pl.CostEstimate(
        flops=2 * b_pad * (ONEHOT_DIM * H_AUG + H_AUG * NUM_CLASSES),
        transcendentals=0,
        bytes_accessed=(b_pad * 4 * (3 + NUM_CLASSES)
                        + 4 * (ONEHOT_DIM * H_AUG + H_AUG * NUM_CLASSES)),
    )

    out_t = pl.pallas_call(
        calcnet_kernel,
        out_shape=jax.ShapeDtypeStruct((NUM_CLASSES, b_pad), jnp.float32),
        grid=grid,
        in_specs=[
            pl.BlockSpec((3, tb), lambda i: (0, i)),                 # idx (streamed)
            pl.BlockSpec((H_AUG, ONEHOT_DIM), lambda i: (0, 0)),     # T1^T (resident)
            pl.BlockSpec((NUM_CLASSES, H_AUG), lambda i: (0, 0)),    # W2^T (resident)
        ],
        out_specs=pl.BlockSpec((NUM_CLASSES, tb), lambda i: (0, i)),
        compiler_params=pltpu.CompilerParams(
            dimension_semantics=("parallel",)),
        cost_estimate=cost,
    )(idx, t1t, w2t)

    # One XLA transpose back to the module's (B, NUM_CLASSES) contract.
    return out_t[:, :B].T


def init_params(key):
    """Deterministic init mimicking PyTorch defaults (Embedding: N(0,1),
    Linear: U(-1/sqrt(fan_in), 1/sqrt(fan_in))). Linear weights stored as
    (in_features, out_features), i.e. transposed vs. PyTorch."""
    k = jax.random.split(key, 6)
    emb_d = jax.random.normal(k[0], (NUM_DIGITS, EMB_DIM), jnp.float32)
    emb_o = jax.random.normal(k[1], (NUM_OPS, EMB_DIM), jnp.float32)

    fan1 = 3 * EMB_DIM
    lim1 = 1.0 / jnp.sqrt(jnp.float32(fan1))
    w1 = jax.random.uniform(k[2], (fan1, HIDDEN_DIM), jnp.float32, -lim1, lim1)
    b1 = jax.random.uniform(k[3], (HIDDEN_DIM,), jnp.float32, -lim1, lim1)

    fan2 = HIDDEN_DIM
    lim2 = 1.0 / jnp.sqrt(jnp.float32(fan2))
    w2 = jax.random.uniform(k[4], (fan2, NUM_CLASSES), jnp.float32, -lim2, lim2)
    b2 = jax.random.uniform(k[5], (NUM_CLASSES,), jnp.float32, -lim2, lim2)
    return (emb_d, emb_o, w1, b1, w2, b2)


def reference_forward(x, y, op, params):
    """Pure-JAX reference of the PyTorch forward."""
    emb_d, emb_o, w1, b1, w2, b2 = params
    vec = jnp.concatenate([emb_d[x], emb_d[y], emb_o[op]], axis=-1)  # (B, 30)
    h = jnp.maximum(vec @ w1 + b1, 0.0)
    return h @ w2 + b2


if __name__ == "__main__":
    key = jax.random.PRNGKey(0)
    pkey, xkey, ykey, okey = jax.random.split(key, 4)
    params = init_params(pkey)

    # B=8: tiny batch matching the module's usage; B=13: non-multiple-of-tile
    # padding path; B=300: multi-step grid path (tb=256 -> grid=(2,)).
    for B in (8, 13, 300):
        kx, ky, ko = jax.random.split(jax.random.fold_in(xkey, B), 3)
        x = jax.random.randint(kx, (B,), 0, NUM_DIGITS, dtype=jnp.int32)
        y = jax.random.randint(ky, (B,), 0, NUM_DIGITS, dtype=jnp.int32)
        op = jax.random.randint(ko, (B,), 0, NUM_OPS, dtype=jnp.int32)

        out = jax.block_until_ready(calcnet_forward(x, y, op, params))
        ref = reference_forward(x, y, op, params)

        assert out.shape == (B, NUM_CLASSES)
        assert jnp.allclose(out, ref, atol=1e-4, rtol=1e-4), \
            f"mismatch vs reference at B={B}"

    print("KERNEL_OK")
</pallas_src>

<mosaic_0001>
module attributes {stable_mosaic.version = 11 : i64} {
  func.func @calcnet_kernel(%arg0: i32, %arg1: memref<3x128xi32, #tpu.memory_space<vmem>>, %arg2: memref<17x23xf32, #tpu.memory_space<vmem>>, %arg3: memref<19x17xf32, #tpu.memory_space<vmem>>, %arg4: memref<19x128xf32, #tpu.memory_space<vmem>>) attributes {dimension_semantics = [#tpu.dimension_semantics<parallel>], iteration_bounds = array<i64: 1>, scalar_prefetch = 0 : i64, scratch_operands = 0 : i64, tpu.core_type = #tpu.core_type<tc>, window_params = [{transform_indices = @transform_0, window_bounds = array<i64: 3, 128>}, {pipeline_mode = #tpu.pipeline_mode<synchronous>, transform_indices = @transform_1, window_bounds = array<i64: 17, 23>}, {pipeline_mode = #tpu.pipeline_mode<synchronous>, transform_indices = @transform_2, window_bounds = array<i64: 19, 17>}, {transform_indices = @transform_3, window_bounds = array<i64: 19, 128>}]} {
    %0 = tpu.iota {dimensions = array<i32: 0>} : vector<23x1xi32>
    %c0 = arith.constant 0 : index
    %c0_0 = arith.constant 0 : index
    %1 = vector.load %arg1[%c0, %c0_0] : memref<3x128xi32, #tpu.memory_space<vmem>>, vector<3x128xi32>
    %2 = vector.extract_strided_slice %1 {offsets = [0, 0], sizes = [1, 128], strides = [1, 1]} : vector<3x128xi32> to vector<1x128xi32>
    %3 = vector.broadcast %2 : vector<1x128xi32> to vector<23x128xi32>
    %4 = vector.broadcast %0 : vector<23x1xi32> to vector<23x128xi32>
    %5 = arith.cmpi eq, %3, %4 : vector<23x128xi32>
    %6 = vector.extract_strided_slice %1 {offsets = [1, 0], sizes = [1, 128], strides = [1, 1]} : vector<3x128xi32> to vector<1x128xi32>
    %7 = vector.broadcast %6 : vector<1x128xi32> to vector<23x128xi32>
    %8 = vector.broadcast %0 : vector<23x1xi32> to vector<23x128xi32>
    %9 = arith.cmpi eq, %7, %8 : vector<23x128xi32>
    %10 = arith.ori %5, %9 : vector<23x128xi1>
    %11 = vector.extract_strided_slice %1 {offsets = [2, 0], sizes = [1, 128], strides = [1, 1]} : vector<3x128xi32> to vector<1x128xi32>
    %12 = vector.broadcast %11 : vector<1x128xi32> to vector<23x128xi32>
    %13 = vector.broadcast %0 : vector<23x1xi32> to vector<23x128xi32>
    %14 = arith.cmpi eq, %12, %13 : vector<23x128xi32>
    %15 = arith.ori %10, %14 : vector<23x128xi1>
    %c22_i32 = arith.constant 22 : i32
    %16 = vector.broadcast %c22_i32 : i32 to vector<23x1xi32>
    %17 = arith.cmpi eq, %0, %16 : vector<23x1xi32>
    %18 = vector.broadcast %17 : vector<23x1xi1> to vector<23x128xi1>
    %19 = arith.ori %15, %18 : vector<23x128xi1>
    %cst = arith.constant 1.000000e+00 : f32
    %cst_1 = arith.constant 0.000000e+00 : f32
    %20 = vector.broadcast %cst : f32 to vector<23x128xf32>
    %21 = vector.broadcast %cst_1 : f32 to vector<23x128xf32>
    %22 = arith.select %19, %20, %21 : vector<23x128xi1>, vector<23x128xf32>
    %c0_2 = arith.constant 0 : index
    %c0_3 = arith.constant 0 : index
    %23 = vector.load %arg2[%c0_2, %c0_3] : memref<17x23xf32, #tpu.memory_space<vmem>>, vector<17x23xf32>
    %cst_4 = arith.constant dense<0.000000e+00> : vector<17x128xf32>
    %24 = tpu.matmul %23, %22, %cst_4 {dimension_numbers = #tpu.dot_dimension_numbers<[1], [0], [0], [1], [0, 0, 1, 1], [], []>} : vector<17x23xf32>, vector<23x128xf32>, vector<17x128xf32> -> vector<17x128xf32>
    %cst_5 = arith.constant 0.000000e+00 : f32
    %25 = vector.broadcast %cst_5 : f32 to vector<17x128xf32>
    %26 = arith.maximumf %24, %25 : vector<17x128xf32>
    %c0_6 = arith.constant 0 : index
    %c0_7 = arith.constant 0 : index
    %27 = vector.load %arg3[%c0_6, %c0_7] : memref<19x17xf32, #tpu.memory_space<vmem>>, vector<19x17xf32>
    %cst_8 = arith.constant dense<0.000000e+00> : vector<19x128xf32>
    %28 = tpu.matmul %27, %26, %cst_8 {dimension_numbers = #tpu.dot_dimension_numbers<[1], [0], [0], [1], [0, 0, 1, 1], [], []>} : vector<19x17xf32>, vector<17x128xf32>, vector<19x128xf32> -> vector<19x128xf32>
    %c0_9 = arith.constant 0 : index
    %c0_10 = arith.constant 0 : index
    %29 = vector.load %arg4[%c0_9, %c0_10] : memref<19x128xf32, #tpu.memory_space<vmem>>, vector<19x128xf32>
    tpu.vector_store %arg4[%c0_9, %c0_10], %28 {strides = array<i32>} : memref<19x128xf32, #tpu.memory_space<vmem>>, vector<19x128xf32>,
    return
  }
  func.func @transform_0(%arg0: i32) -> (i32, i32) {
    %c0_i32 = arith.constant 0 : i32
    %c0_i32_0 = arith.constant 0 : i32
    return %c0_i32, %arg0 : i32, i32
  }
  func.func @transform_1(%arg0: i32) -> (i32, i32) {
    %c0_i32 = arith.constant 0 : i32
    %c0_i32_0 = arith.constant 0 : i32
    %c0_i32_1 = arith.constant 0 : i32
    return %c0_i32, %c0_i32_0 : i32, i32
  }
  func.func @transform_2(%arg0: i32) -> (i32, i32) {
    %c0_i32 = arith.constant 0 : i32
    %c0_i32_0 = arith.constant 0 : i32
    %c0_i32_1 = arith.constant 0 : i32
    return %c0_i32, %c0_i32_0 : i32, i32
  }
  func.func @transform_3(%arg0: i32) -> (i32, i32) {
    %c0_i32 = arith.constant 0 : i32
    %c0_i32_0 = arith.constant 0 : i32
    return %c0_i32, %arg0 : i32, i32
  }
}

</mosaic_0001>

<llo_original>
// kernel: calcnet_forward.1
$region0: #{calcnet_forward.1}
  #allocation0 [shape = 'u32[]', space=smem, size = 0x4, offset = 0x4, fixed_abs, tag = 'smem constant byte address 0x4 - core index']
  #allocation1 [shape = 'u32[144,128]{1,0:T(1,128)}', space=vmem, size = 0x12000, scoped, tag = 'internal scratch']
  %s0 = inlined_call_operand.vmem [shape: s32[3,128], index: 0, kind: input, shape index: {}]
  %s1 = inlined_call_operand.vmem [shape: f32[17,23], index: 1, kind: input, shape index: {}]
  %s2 = inlined_call_operand.vmem [shape: f32[19,17], index: 2, kind: input, shape index: {}]
  %s3 = inlined_call_operand.vmem [shape: f32[19,128], index: 3, kind: output, shape index: {}]
  %s4 = sld [smem:[#allocation0]]
  $region22: #{calcnet_forward.1} parent=0
    _
  %s6 = ssub.s32 1, %s4
  %s7 = scalar_select 0, %s6, %s4
  // Predicated region
  $region2: #{calcnet_forward.1} parent=0 // pred_check
    _
  $region3: #{calcnet_forward.1} parent=0 // pred_check_branch
    %9 = sbr.rel (0) target = $region5
  $region4: #{calcnet_forward.1} parent=0 // pred_region
    _
  $region5: #{calcnet_forward.1} parent=0 // pred_fallthru
    _
  // Predicated region
  $region6: #{calcnet_forward.1} parent=0 // pred_check
    _
  $region7: #{calcnet_forward.1} parent=0 // pred_check_branch
    %11 = sbr.rel (0) target = $region9
  $region8: #{calcnet_forward.1} parent=0 // pred_region
    _
  $region9: #{calcnet_forward.1} parent=0 // pred_fallthru
    _
  // Predicated region
  $region10: #{calcnet_forward.1} parent=0 // pred_check
    _
  $region11: #{calcnet_forward.1} parent=0 // pred_check_branch
    %13 = sbr.rel (0) target = $region13
  $region12: #{calcnet_forward.1} parent=0 // pred_region
    _
  $region13: #{calcnet_forward.1} parent=0 // pred_fallthru
    _
  %v14 = vlaneseq
  %v15 = vshrl.u32 %v14, 7
  %v16 = vadd.s32 %v15, 8
  %v17 = vadd.s32 %v15, 16
  %v18 = vld [vmem:[%s0] sm:$0x7]
  %v19 = vlaneseq
  %v20 = vshrl.u32 %v19, 7
  %v21 = vsub.s32 0, %v20
  %v22 = vrot.slane %v18, %v21
  %vm23 = vcmp.eq.s32.totalorder %v22, %v15
  %vm24 = vcmp.eq.s32.totalorder %v22, %v16
  %vm25 = vcmp.eq.s32.totalorder %v22, %v17
  %v26 = vlaneseq
  %v27 = vshrl.u32 %v26, 7
  %v28 = vsub.s32 1, %v27
  %v29 = vrot.slane %v18, %v28
  %vm30 = vcmp.eq.s32.totalorder %v29, %v15
  %vm31 = vcmp.eq.s32.totalorder %v29, %v16
  %vm32 = vcmp.eq.s32.totalorder %v29, %v17
  %vm33 = vmor %vm23, %vm30
  %vm34 = vmor %vm24, %vm31
  %vm35 = vmor %vm25, %vm32
  %v36 = vlaneseq
  %v37 = vshrl.u32 %v36, 7
  %v38 = vsub.s32 2, %v37
  %v39 = vrot.slane %v18, %v38
  %vm40 = vcmp.eq.s32.totalorder %v39, %v15
  %vm41 = vcmp.eq.s32.totalorder %v39, %v16
  %vm42 = vcmp.eq.s32.totalorder %v39, %v17
  %vm43 = vmor %vm33, %vm40
  %vm44 = vmor %vm34, %vm41
  %vm45 = vmor %vm35, %vm42
  %vm46 = vcmp.eq.s32.totalorder %v15, 22
  %vm47 = vcmp.eq.s32.totalorder %v16, 22
  %vm48 = vcmp.eq.s32.totalorder %v17, 22
  %v49 = vsel %vm46, 1, 0
  %v50 = vsel %vm47, 1, 0
  %v51 = vsel %vm48, 1, 0
  %vm52 = vcmp.eq.s32.totalorder %v49, 1
  %vm53 = vcmp.eq.s32.totalorder %v50, 1
  %vm54 = vcmp.eq.s32.totalorder %v51, 1
  %vm55 = vmor %vm43, %vm52
  %vm56 = vmor %vm44, %vm53
  %vm57 = vmor %vm45, %vm54
  %v58 = vsel %vm55, 1.0, 0.0
  %v59 = vsel %vm56, 1.0, 0.0
  %v60 = vsel %vm57, 1.0, 0.0
  %v61 = vld [vmem:[%s1] sm:$0xff]
  %v62 = vld [vmem:[%s1 + $0x8] sm:$0xff]
  %v63 = vld [vmem:[%s1 + $0x10] sm:$0x1]
  %vm64 = vcmask 187392
  %v66 = vsel %vm64, %v61, 0
  %v69 = vsel %vm64, %v62, 0
  %v72 = vsel %vm64, %v63, 0
  %vm74 = vcmask 1046528
  %v76 = vsel %vm74, %v60, 0
  %78 = vmatprep.subr.mxu0 0.0
  %79 = vmatpush1.msra.mxu0 0.0
  %80 = vmatprep.subr.mxu0 0.0
  %81 = vmatpush1.msra.mxu0 0.0
  %82 = vmatprep.subr.mxu0 0.0
  %83 = vmatpush1.msra.mxu0 0.0
  %84 = vmatprep.subr.mxu0 0.0
  %85 = vmatpush1.msra.mxu0 0.0
  %86 = vmatprep.subr.mxu0 0.0
  %87 = vmatpush1.msra.mxu0 0.0
  %88 = vmatprep.subr.mxu0 0.0
  %89 = vmatpush1.msra.mxu0 0.0
  %90 = vmatprep.subr.mxu0 0.0
  %91 = vmatpush1.msra.mxu0 0.0
  %92 = vmatprep.subr.mxu0 0.0
  %93 = vmatpush1.msra.mxu0 0.0
  %94 = vmatprep.subr.mxu0 0.0
  %95 = vmatpush1.msra.mxu0 0.0
  %96 = vmatprep.subr.mxu0 0.0
  %97 = vmatpush1.msra.mxu0 0.0
  %98 = vmatprep.subr.mxu0 0.0
  %99 = vmatpush1.msra.mxu0 0.0
  %100 = vmatprep.subr.mxu0 0.0
  %101 = vmatpush1.msra.mxu0 0.0
  %102 = vmatprep.subr.mxu0 0.0
  %103 = vmatpush1.msra.mxu0 0.0
  %104 = vmatprep.subr.mxu0 0.0
  %105 = vmatpush1.msra.mxu0 %v76
  %106 = vmatprep.subr.mxu0 0.0
  %107 = vmatpush1.msra.mxu0 %v59
  %108 = vmatprep.subr.mxu0 0.0
  %109 = vmatpush1.msra.mxu0 %v58
  %110 = vmatprep.subr.mxu0 0.0
  %111 = vmatpush2.msra.mxu0 0.0
  %112 = vmatprep.subr.mxu0 0.0
  %113 = vmatpush2.msra.mxu0 0.0
  %114 = vmatprep.subr.mxu0 0.0
  %115 = vmatpush2.msra.mxu0 0.0
  %116 = vmatprep.subr.mxu0 0.0
  %117 = vmatpush2.msra.mxu0 0.0
  %118 = vmatprep.subr.mxu0 0.0
  %119 = vmatpush2.msra.mxu0 0.0
  %120 = vmatprep.subr.mxu0 0.0
  %121 = vmatpush2.msra.mxu0 0.0
  %122 = vmatprep.subr.mxu0 0.0
  %123 = vmatpush2.msra.mxu0 0.0
  %124 = vmatprep.subr.mxu0 0.0
  %125 = vmatpush2.msra.mxu0 0.0
  %126 = vmatprep.subr.mxu0 0.0
  %127 = vmatpush2.msra.mxu0 0.0
  %128 = vmatprep.subr.mxu0 0.0
  %129 = vmatpush2.msra.mxu0 0.0
  %130 = vmatprep.subr.mxu0 0.0
  %131 = vmatpush2.msra.mxu0 0.0
  %132 = vmatprep.subr.mxu0 0.0
  %133 = vmatpush2.msra.mxu0 0.0
  %134 = vmatprep.subr.mxu0 0.0
  %135 = vmatpush2.msra.mxu0 0.0
  %136 = vmatprep.subr.mxu0 0.0
  %137 = vmatpush2.msra.mxu0 0.0
  %138 = vmatprep.subr.mxu0 0.0
  %139 = vmatpush2.msra.mxu0 0.0
  %140 = vmatprep.subr.mxu0 0.0
  %141 = vmatpush2.msra.mxu0 0.0
  %142 = vmatprep.mubr.f32.mxu0 0.0
  %143 = vmatmul.mubr.f32.gmra.mxu0 %v66
  %v144 = vpop.f32.mrf.mxu0
  %v145 = vadd.f32 0.0, %v144
  %v146 = vpop.f32.mrf.mxu0
  %147 = vmatprep.mubr.f32.mxu0 0.0
  %148 = vmatmul.mubr.f32.gmra.mxu0 %v69
  %v149 = vpop.f32.mrf.mxu0
  %v150 = vadd.f32 0.0, %v149
  %v151 = vpop.f32.mrf.mxu0
  %152 = vmatprep.mubr.f32.mxu0 0.0
  %153 = vmatmul.mubr.f32.gmra.mxu0 %v72
  %v154 = vpop.f32.mrf.mxu0
  %v155 = vadd.f32 0.0, %v154
  %v156 = vpop.f32.mrf.mxu0
  %157 = vdwg.mxu0
  %v158 = vmax.f32 %v145, 0.0
  %v159 = vmax.f32 %v150, 0.0
  %v160 = vmax.f32 %v155, 0.0
  %v161 = vld [vmem:[%s2] sm:$0xff]
  %v162 = vld [vmem:[%s2 + $0x8] sm:$0xff]
  %v163 = vld [vmem:[%s2 + $0x10] sm:$0x7]
  %vm164 = vcmask 138240
  %v166 = vsel %vm164, %v161, 0
  %v169 = vsel %vm164, %v162, 0
  %v172 = vsel %vm164, %v163, 0
  %vm174 = vcmask 1040384
  %v176 = vsel %vm174, %v160, 0
  %178 = vmatprep.subr.mxu0 0.0
  %179 = vmatpush1.msra.mxu0 0.0
  %180 = vmatprep.subr.mxu0 0.0
  %181 = vmatpush1.msra.mxu0 0.0
  %182 = vmatprep.subr.mxu0 0.0
  %183 = vmatpush1.msra.mxu0 0.0
  %184 = vmatprep.subr.mxu0 0.0
  %185 = vmatpush1.msra.mxu0 0.0
  %186 = vmatprep.subr.mxu0 0.0
  %187 = vmatpush1.msra.mxu0 0.0
  %188 = vmatprep.subr.mxu0 0.0
  %189 = vmatpush1.msra.mxu0 0.0
  %190 = vmatprep.subr.mxu0 0.0
  %191 = vmatpush1.msra.mxu0 0.0
  %192 = vmatprep.subr.mxu0 0.0
  %193 = vmatpush1.msra.mxu0 0.0
  %194 = vmatprep.subr.mxu0 0.0
  %195 = vmatpush1.msra.mxu0 0.0
  %196 = vmatprep.subr.mxu0 0.0
  %197 = vmatpush1.msra.mxu0 0.0
  %198 = vmatprep.subr.mxu0 0.0
  %199 = vmatpush1.msra.mxu0 0.0
  %200 = vmatprep.subr.mxu0 0.0
  %201 = vmatpush1.msra.mxu0 0.0
  %202 = vmatprep.subr.mxu0 0.0
  %203 = vmatpush1.msra.mxu0 0.0
  %204 = vmatprep.subr.mxu0 0.0
  %205 = vmatpush1.msra.mxu0 %v176
  %206 = vmatprep.subr.mxu0 0.0
  %207 = vmatpush1.msra.mxu0 %v159
  %208 = vmatprep.subr.mxu0 0.0
  %209 = vmatpush1.msra.mxu0 %v158
  %210 = vmatprep.subr.mxu0 0.0
  %211 = vmatpush2.msra.mxu0 0.0
  %212 = vmatprep.subr.mxu0 0.0
  %213 = vmatpush2.msra.mxu0 0.0
  %214 = vmatprep.subr.mxu0 0.0
  %215 = vmatpush2.msra.mxu0 0.0
  %216 = vmatprep.subr.mxu0 0.0
  %217 = vmatpush2.msra.mxu0 0.0
  %218 = vmatprep.subr.mxu0 0.0
  %219 = vmatpush2.msra.mxu0 0.0
  %220 = vmatprep.subr.mxu0 0.0
  %221 = vmatpush2.msra.mxu0 0.0
  %222 = vmatprep.subr.mxu0 0.0
  %223 = vmatpush2.msra.mxu0 0.0
  %224 = vmatprep.subr.mxu0 0.0
  %225 = vmatpush2.msra.mxu0 0.0
  %226 = vmatprep.subr.mxu0 0.0
  %227 = vmatpush2.msra.mxu0 0.0
  %228 = vmatprep.subr.mxu0 0.0
  %229 = vmatpush2.msra.mxu0 0.0
  %230 = vmatprep.subr.mxu0 0.0
  %231 = vmatpush2.msra.mxu0 0.0
  %232 = vmatprep.subr.mxu0 0.0
  %233 = vmatpush2.msra.mxu0 0.0
  %234 = vmatprep.subr.mxu0 0.0
  %235 = vmatpush2.msra.mxu0 0.0
  %236 = vmatprep.subr.mxu0 0.0
  %237 = vmatpush2.msra.mxu0 0.0
  %238 = vmatprep.subr.mxu0 0.0
  %239 = vmatpush2.msra.mxu0 0.0
  %240 = vmatprep.subr.mxu0 0.0
  %241 = vmatpush2.msra.mxu0 0.0
  %242 = vmatprep.mubr.f32.mxu0 0.0
  %243 = vmatmul.mubr.f32.gmra.mxu0 %v166
  %v244 = vpop.f32.mrf.mxu0
  %v245 = vadd.f32 0.0, %v244
  %v246 = vpop.f32.mrf.mxu0
  %247 = vmatprep.mubr.f32.mxu0 0.0
  %248 = vmatmul.mubr.f32.gmra.mxu0 %v169
  %v249 = vpop.f32.mrf.mxu0
  %v250 = vadd.f32 0.0, %v249
  %v251 = vpop.f32.mrf.mxu0
  %252 = vmatprep.mubr.f32.mxu0 0.0
  %253 = vmatmul.mubr.f32.gmra.mxu0 %v172
  %v254 = vpop.f32.mrf.mxu0
  %v255 = vadd.f32 0.0, %v254
  %v256 = vpop.f32.mrf.mxu0
  %257 = vdwg.mxu0
  %258 = vst [vmem:[%s3] sm:$0xff] %v245
  %259 = vst [vmem:[%s3 + $0x8] sm:$0xff] %v250
  %260 = vst [vmem:[%s3 + $0x10] sm:$0x7] %v255
  // Predicated region
  $region14: #{calcnet_forward.1} parent=0 // pred_check
    _
  $region15: #{calcnet_forward.1} parent=0 // pred_check_branch
    %262 = sbr.rel (0) target = $region17
  $region16: #{calcnet_forward.1} parent=0 // pred_region
    _
  $region17: #{calcnet_forward.1} parent=0 // pred_fallthru
    _
  // Predicated region
  $region18: #{calcnet_forward.1} parent=0 // pred_check
    _
  $region19: #{calcnet_forward.1} parent=0 // pred_check_branch
    %264 = sbr.rel (0) target = $region21
  $region20: #{calcnet_forward.1} parent=0 // pred_region
    _
  $region21: #{calcnet_forward.1} parent=0 // pred_fallthru
    _

</llo_original>
